<compile_context>
chip_gen: v5e
topology: v5e:2x2
jax: 0.10.0
libtpu: 0.0.40
codegen_flags: <defaults>
</compile_context>

<pallas_src>
import numpy as np
import jax
import jax.numpy as jnp
from jax.experimental import pallas as pl
from jax.experimental.pallas import tpu as pltpu

IGNORE_INDEX = -100  # F.nll_loss default ignore_index
BLANK = 0            # CTC blank label index used by the synthetic alignment


# ----------------------------------------------------------------------------
# Pallas kernel: log_softmax + NLL gather + ignore masking  (one row tile per step)
# ----------------------------------------------------------------------------
def _folded_reduce(x, binop, reduce_fn):
    """Reduce (rows, V) -> (rows, 1) over the lane axis.

    When V is a multiple of 256, pre-fold 128-lane-aligned halves with VPU ops
    (4 VALUs) before the final cross-lane reduce (2 XLUs).  Exact for max and for
    the one-hot select+sum (at most one nonzero per row)."""
    v = x.shape[-1]
    while v >= 256 and v % 256 == 0:
        h = v // 2
        x = binop(x[:, :h], x[:, h:])
        v = h
    return reduce_fn(x, axis=-1, keepdims=True)


def _nll_logsoftmax_kernel(x_ref, t_ref, loss_ref):
    # x_ref:    (rows, V)  logits tile (native dtype)
    # t_ref:    (rows, 1)  int32 aligned targets (IGNORE_INDEX where ignored)
    # loss_ref: (rows, 1)  per-row NLL (0 where ignored)
    x = x_ref[...].astype(jnp.float32)                     # f32 math in-register
    t = t_ref[...]                                         # (rows, 1) int32
    rows, v = x.shape

    m = _folded_reduce(x, jnp.maximum, jnp.max)            # (rows, 1)
    z = x - m
    ez = jnp.exp(z)
    lse = jnp.log(_folded_reduce(ez, jnp.add, jnp.sum))    # (rows, 1)

    cols = jax.lax.broadcasted_iota(jnp.int32, (rows, v), 1)
    valid = t != IGNORE_INDEX                              # (rows, 1) bool
    t_safe = jnp.where(valid, t, 0)
    # Select+sum gather: exactly one column matches per row -> exact, no one-hot temps.
    z_t = _folded_reduce(jnp.where(cols == t_safe, z, 0.0), jnp.add, jnp.sum)

    # -log_softmax(x)[row, target], with ignored / garbage tail rows forced to 0
    # via a select (NOT a multiply, so inf/NaN in those rows cannot leak through).
    loss_ref[...] = jnp.where(valid, lse - z_t, 0.0)


# ----------------------------------------------------------------------------
# Wrapper: tiling heuristics + pallas_call
# ----------------------------------------------------------------------------
def _vmem_capacity_bytes():
    """Per-generation physical VMEM (v7x has half of v5e/v6e)."""
    try:
        return int(pltpu.get_tpu_info().vmem_capacity_bytes)
    except Exception:
        pass
    try:
        kind = jax.devices()[0].device_kind.lower()
    except Exception:
        kind = ""
    if "v5" in kind or "v6" in kind:
        return 128 * 1024 * 1024     # v5e / v6e
    return 64 * 1024 * 1024          # v7x (and conservative default)


def _round_up(n, m):
    return ((n + m - 1) // m) * m


def _round_down(n, m):
    return (n // m) * m


def nll_loss_elementwise(logits, targets_new, *, rows=None):
    """Per-element NLL loss (B, T) via a row-tiled Pallas kernel (0 at ignored frames)."""
    B, T, V = logits.shape
    N = B * T
    x = logits.reshape(N, V)                          # native dtype: NO wrapper upcast
    t = targets_new.reshape(N, 1).astype(jnp.int32)
    itemsize = jnp.dtype(x.dtype).itemsize
    pack = max(8, 32 // max(1, itemsize))             # sublane packing: f32->8, bf16->16, i8->32
    vmem_cap = _vmem_capacity_bytes()

    if rows is None:
        target_tile_bytes = 4 << 20                   # ~4 MiB per (double-buffered) logits tile
        rows = target_tile_bytes // max(1, V * itemsize)
    rows = max(pack, min(32768, _round_down(int(rows), pack)))
    rows = min(rows, _round_up(N, pack))              # don't over-allocate tiny problems
    if rows >= N and N > pack:
        # keep >= 2 grid steps so the "parallel" axis spans both TensorCores (v7x)
        rows = max(pack, _round_up(pl.cdiv(N, 2), pack))
    # VMEM safety clamp (v7x has only 64 MiB per TensorCore)
    max_tile_bytes = int(vmem_cap * 0.30)
    while rows > pack and rows * V * itemsize > max_tile_bytes:
        rows = max(pack, _round_down(rows // 2, pack))

    tile_bytes = rows * V * itemsize
    needed = 2 * tile_bytes + 4 * rows * 4 + (4 << 20)   # logits dbuf + tgt/out dbuf + slack
    vmem_limit = int(min(int(vmem_cap * 0.70), max(needed, 32 << 20)))

    grid = (pl.cdiv(N, rows),)                        # ragged last block; NO logits pad copy
    loss2d = pl.pallas_call(
        _nll_logsoftmax_kernel,
        out_shape=jax.ShapeDtypeStruct((N, 1), jnp.float32),
        grid=grid,
        in_specs=[pl.BlockSpec((rows, V), lambda i: (i, 0)),
                  pl.BlockSpec((rows, 1), lambda i: (i, 0))],
        out_specs=pl.BlockSpec((rows, 1), lambda i: (i, 0)),
        compiler_params=pltpu.CompilerParams(
            dimension_semantics=("parallel",),        # shards row tiles across both TCs on v7x
            vmem_limit_bytes=vmem_limit),
        cost_estimate=pl.CostEstimate(
            flops=5 * N * V,
            transcendentals=N * V,
            bytes_accessed=N * V * itemsize + N * 8),
    )(x, t)

    return loss2d[:, 0].reshape(B, T)


def _ref_nll(logits, targets_new):
    """Pure-JAX reference for correctness checks."""
    logp = jax.nn.log_softmax(logits.astype(jnp.float32), axis=-1)
    valid = targets_new != IGNORE_INDEX
    t_safe = jnp.where(valid, targets_new, 0)
    picked = jnp.take_along_axis(logp, t_safe[..., None].astype(jnp.int32), axis=-1)[..., 0]
    return jnp.where(valid, -picked, 0.0)


# ----------------------------------------------------------------------------
# Host-side forced alignment (stand-in for get_alignment_3d)
# ----------------------------------------------------------------------------
def _viterbi_align_ctc(scores, tgt):
    """CTC forced alignment (Viterbi) over expanded sequence blank,l1,blank,...,blank."""
    T_len = scores.shape[0]
    U = len(tgt)
    S = 2 * U + 1
    ext = np.full(S, BLANK, dtype=np.int64)
    ext[1::2] = tgt
    NEG = -1e30
    dp = np.full(S, NEG)
    dp[0] = scores[0, ext[0]]
    if S > 1:
        dp[1] = scores[0, ext[1]]
    bp = np.zeros((T_len, S), dtype=np.int64)
    for t in range(1, T_len):
        new = np.full(S, NEG)
        for s in range(S):
            best, arg = dp[s], s
            if s - 1 >= 0 and dp[s - 1] > best:
                best, arg = dp[s - 1], s - 1
            if s - 2 >= 0 and ext[s] != BLANK and ext[s] != ext[s - 2] and dp[s - 2] > best:
                best, arg = dp[s - 2], s - 2
            new[s] = best + scores[t, ext[s]]
            bp[t, s] = arg
        dp = new
    s = S - 1
    if S > 1 and dp[S - 2] > dp[S - 1]:
        s = S - 2
    labels = np.zeros(T_len, dtype=np.int64)
    for t in range(T_len - 1, -1, -1):
        labels[t] = ext[s]
        s = bp[t, s]
    return labels


def _viterbi_align_plain(scores, tgt):
    """Monotonic forced alignment without blanks (each frame gets one target label)."""
    T_len = scores.shape[0]
    U = len(tgt)
    NEG = -1e30
    dp = np.full(U, NEG)
    dp[0] = scores[0, tgt[0]]
    bp = np.zeros((T_len, U), dtype=np.int64)
    for t in range(1, T_len):
        new = np.full(U, NEG)
        for s in range(U):
            best, arg = dp[s], s
            if s - 1 >= 0 and dp[s - 1] > best:
                best, arg = dp[s - 1], s - 1
            new[s] = best + scores[t, tgt[s]]
            bp[t, s] = arg
        dp = new
    s = U - 1
    labels = np.zeros(T_len, dtype=np.int64)
    for t in range(T_len - 1, -1, -1):
        labels[t] = tgt[s]
        s = bp[t, s]
    return labels


def get_alignment_3d(logits, targets, logits_lengths, targets_lengths, is_ctc):
    """Per-frame aligned targets (B, T) int32; frames past logits_lengths -> IGNORE_INDEX.
    Uses raw logits as scores (Viterbi path is invariant to the per-frame log-softmax shift)."""
    logits = np.asarray(logits, dtype=np.float64)
    targets = np.asarray(targets, dtype=np.int64)
    logits_lengths = np.asarray(logits_lengths, dtype=np.int64)
    targets_lengths = np.asarray(targets_lengths, dtype=np.int64)
    B, T, _ = logits.shape
    out = np.full((B, T), IGNORE_INDEX, dtype=np.int32)
    for b in range(B):
        T_len = int(logits_lengths[b])
        U_len = int(targets_lengths[b])
        tgt = targets[b, :U_len]
        if T_len <= 0 or U_len <= 0:
            continue
        if is_ctc:
            lab = _viterbi_align_ctc(logits[b, :T_len], tgt)
        else:
            lab = _viterbi_align_plain(logits[b, :T_len], tgt)
        out[b, :T_len] = lab.astype(np.int32)
    return out


# ----------------------------------------------------------------------------
# Module-equivalent wrapper
# ----------------------------------------------------------------------------
class AlignedTargetsLoss:
    def __init__(self, is_ctc, reduce=True, reduce_by_sequence=False):
        self._reduce = reduce
        self._is_ctc = is_ctc
        self._reduce_by_sequence = reduce_by_sequence

    def __call__(self, logits, targets, logits_lengths, targets_lengths):
        # logits: (B, T, V); targets: (B, U) filled with -1 past targets_lengths
        targets_new = get_alignment_3d(
            np.asarray(logits), np.asarray(targets),
            np.asarray(logits_lengths), np.asarray(targets_lengths),
            is_ctc=self._is_ctc)
        targets_new = jnp.asarray(targets_new, dtype=jnp.int32)

        loss_elem = nll_loss_elementwise(logits, targets_new)        # (B, T), 0 where ignored
        valid_mask = (targets_new != IGNORE_INDEX).astype(jnp.float32)  # computed outside kernel

        if self._reduce:
            # F.nll_loss(reduce=True): mean over non-ignored elements
            return jnp.sum(loss_elem) / jnp.maximum(jnp.sum(valid_mask), 1.0)
        loss = loss_elem  # (B, T), zeros at ignored positions (matches nll_loss reduce=False)
        if self._reduce_by_sequence:
            loss = jnp.sum(loss, axis=-1) / jnp.asarray(logits_lengths, jnp.float32)
        return loss


# ----------------------------------------------------------------------------
if __name__ == "__main__":
    B, T, V, U = 2, 8, 16, 3

    key = jax.random.PRNGKey(0)
    k_logits, k_tgt, k_lg2, k_tg2 = jax.random.split(key, 4)
    logits = jax.random.normal(k_logits, (B, T, V), dtype=jnp.float32)

    targets_lengths = jnp.array([3, 2], dtype=jnp.int32)
    logits_lengths = jnp.array([8, 6], dtype=jnp.int32)
    # random labels in [1, V-1] (0 reserved for blank), -1 past target length
    raw_tgt = jax.random.randint(k_tgt, (B, U), 1, V, dtype=jnp.int32)
    pad_mask = jnp.arange(U)[None, :] < targets_lengths[:, None]
    targets = jnp.where(pad_mask, raw_tgt, -1)

    # reduced scalar loss (CTC-style alignment)
    loss_mean = AlignedTargetsLoss(is_ctc=True, reduce=True)(
        logits, targets, logits_lengths, targets_lengths)
    # per-sequence loss (no-blank alignment)
    loss_seq = AlignedTargetsLoss(is_ctc=False, reduce=False, reduce_by_sequence=True)(
        logits, targets, logits_lengths, targets_lengths)

    jax.block_until_ready(loss_mean)
    jax.block_until_ready(loss_seq)
    assert loss_mean.shape == () and bool(jnp.isfinite(loss_mean))
    assert loss_seq.shape == (B,) and bool(jnp.all(jnp.isfinite(loss_seq)))

    # Correctness check against a pure-JAX reference, including a ragged last block
    # (N = 21 rows not divisible by the chosen row tile) and ignored frames.
    B2, T2, V2 = 3, 7, 16
    lg2 = jax.random.normal(k_lg2, (B2, T2, V2), dtype=jnp.float32)
    tg2 = jax.random.randint(k_tg2, (B2, T2), 0, V2, dtype=jnp.int32)
    keep = jnp.arange(T2)[None, :] < jnp.array([7, 4, 6])[:, None]
    tg2 = jnp.where(keep, tg2, IGNORE_INDEX)
    got = nll_loss_elementwise(lg2, tg2)
    want = _ref_nll(lg2, tg2)
    jax.block_until_ready(got)
    np.testing.assert_allclose(np.asarray(got), np.asarray(want), rtol=1e-5, atol=1e-5)

    print("KERNEL_OK")
</pallas_src>

<mosaic_0001>
module attributes {stable_mosaic.version = 11 : i64} {
  func.func @_nll_logsoftmax_kernel(%arg0: i32, %arg1: memref<8x16xf32, #tpu.memory_space<vmem>>, %arg2: memref<8x1xi32, #tpu.memory_space<vmem>>, %arg3: memref<8x1xf32, #tpu.memory_space<vmem>>) attributes {dimension_semantics = [#tpu.dimension_semantics<parallel>], iteration_bounds = array<i64: 2>, scalar_prefetch = 0 : i64, scratch_operands = 0 : i64, tpu.core_type = #tpu.core_type<tc>, window_params = [{transform_indices = @transform_0, window_bounds = array<i64: 8, 16>}, {transform_indices = @transform_1, window_bounds = array<i64: 8, 1>}, {transform_indices = @transform_2, window_bounds = array<i64: 8, 1>}]} {
    %c0 = arith.constant 0 : index
    %c0_0 = arith.constant 0 : index
    %0 = vector.load %arg1[%c0, %c0_0] : memref<8x16xf32, #tpu.memory_space<vmem>>, vector<8x16xf32>
    %c0_1 = arith.constant 0 : index
    %c0_2 = arith.constant 0 : index
    %1 = vector.load %arg2[%c0_1, %c0_2] : memref<8x1xi32, #tpu.memory_space<vmem>>, vector<8x1xi32>
    %cst = arith.constant dense<0xFF800000> : vector<8xf32>
    %2 = vector.multi_reduction <maximumf>, %0, %cst [1] : vector<8x16xf32> to vector<8xf32>
    %3 = vector.shape_cast %2 : vector<8xf32> to vector<8x1xf32>
    %4 = vector.broadcast %3 : vector<8x1xf32> to vector<8x16xf32>
    %5 = arith.subf %0, %4 : vector<8x16xf32>
    %6 = math.exp %5 : vector<8x16xf32>
    %cst_3 = arith.constant dense<0.000000e+00> : vector<8xf32>
    %7 = vector.multi_reduction <add>, %6, %cst_3 [1] : vector<8x16xf32> to vector<8xf32>
    %8 = vector.shape_cast %7 : vector<8xf32> to vector<8x1xf32>
    %9 = math.log %8 : vector<8x1xf32>
    %10 = tpu.iota {dimensions = array<i32: 1>} : vector<8x16xi32>
    %c-100_i32 = arith.constant -100 : i32
    %11 = vector.broadcast %c-100_i32 : i32 to vector<8x1xi32>
    %12 = arith.cmpi ne, %1, %11 : vector<8x1xi32>
    %c0_i32 = arith.constant 0 : i32
    %13 = vector.broadcast %c0_i32 : i32 to vector<8x1xi32>
    %14 = arith.select %12, %1, %13 : vector<8x1xi1>, vector<8x1xi32>
    %15 = vector.broadcast %14 : vector<8x1xi32> to vector<8x16xi32>
    %16 = arith.cmpi eq, %10, %15 : vector<8x16xi32>
    %cst_4 = arith.constant 0.000000e+00 : f32
    %17 = vector.broadcast %cst_4 : f32 to vector<8x16xf32>
    %18 = arith.select %16, %5, %17 : vector<8x16xi1>, vector<8x16xf32>
    %cst_5 = arith.constant dense<0.000000e+00> : vector<8xf32>
    %19 = vector.multi_reduction <add>, %18, %cst_5 [1] : vector<8x16xf32> to vector<8xf32>
    %20 = vector.shape_cast %19 : vector<8xf32> to vector<8x1xf32>
    %21 = arith.subf %9, %20 : vector<8x1xf32>
    %cst_6 = arith.constant 0.000000e+00 : f32
    %22 = vector.broadcast %cst_6 : f32 to vector<8x1xf32>
    %23 = arith.select %12, %21, %22 : vector<8x1xi1>, vector<8x1xf32>
    %c0_7 = arith.constant 0 : index
    %c0_8 = arith.constant 0 : index
    %24 = vector.load %arg3[%c0_7, %c0_8] : memref<8x1xf32, #tpu.memory_space<vmem>>, vector<8x1xf32>
    tpu.vector_store %arg3[%c0_7, %c0_8], %23 {strides = array<i32>} : memref<8x1xf32, #tpu.memory_space<vmem>>, vector<8x1xf32>,
    return
  }
  func.func @transform_0(%arg0: i32) -> (i32, i32) {
    %c0_i32 = arith.constant 0 : i32
    %c0_i32_0 = arith.constant 0 : i32
    return %arg0, %c0_i32 : i32, i32
  }
  func.func @transform_1(%arg0: i32) -> (i32, i32) {
    %c0_i32 = arith.constant 0 : i32
    %c0_i32_0 = arith.constant 0 : i32
    return %arg0, %c0_i32 : i32, i32
  }
  func.func @transform_2(%arg0: i32) -> (i32, i32) {
    %c0_i32 = arith.constant 0 : i32
    %c0_i32_0 = arith.constant 0 : i32
    return %arg0, %c0_i32 : i32, i32
  }
}

</mosaic_0001>

<llo_original>
// kernel: tpu_custom_call.1
$region0: #{tpu_custom_call.1}
  #allocation0 [shape = 'u32[]', space=smem, size = 0x4, offset = 0x4, fixed_abs, tag = 'smem constant byte address 0x4 - core index']
  #allocation1 [shape = 'u32[72,128]{1,0:T(1,128)}', space=vmem, size = 0x9000, scoped, tag = 'internal scratch']
  %s0 = inlined_call_operand.vmem [shape: f32[16,16], index: 0, kind: input, shape index: {}]
  %s1 = inlined_call_operand.vmem [shape: s32[16,1], index: 1, kind: input, shape index: {}]
  %s2 = inlined_call_operand.vmem [shape: f32[16,1], index: 2, kind: output, shape index: {}]
  %s3 = sld [smem:[#allocation0]]
  $region41: #{tpu_custom_call.1} parent=0
    _
  %s5 = ssub.s32 1, %s3
  %s6 = scalar_select 0, %s5, %s3
  loop: start=0, step=1, limit=4
  $region2: #{tpu_custom_call.1} parent=0 // loop_pre_header
    _
  $region3: #{tpu_custom_call.1} parent=0 // loop_header
    %s8 = sphi 0, %s12
    %p9 = scmp.ge.s32.totalorder %s8, 4
    %s18 = sphi 0, %s20
    %s21 = sphi 0, %s18
    %s22 = sphi 0, %s21
    %s38 = sphi 0, %s22
    %s44 = sphi 0, %s46
    %s47 = sphi 0, %s44
    %s48 = sphi 0, %s47
    %s64 = sphi 0, %s48
    %s70 = sphi 0, %s72
    %s73 = sphi 0, %s70
    %s74 = sphi 0, %s73
    %s90 = sphi 0, %s74
  $region4: #{tpu_custom_call.1} parent=0 // loop_header_branch
    %11 = sbr.rel (%p9) target = $region8
  $region5: #{tpu_custom_call.1} parent=0 // loop_body
    %s13 = ssub.s32 %s8, 1
    %s14 = ssub.s32 %s8, 2
    %s15 = sadd.s32 %s8, 1
    %s16 = ssub.s32 %s8, %s15
    %p17 = scmp.eq.s32.totalorder %s16, 0
    %s19 = sadd.s32 %s18, 1
    %s20 = scalar_select %p17, %s18, %s19
    %p23 = pneg %p17
    %p24 = scmp.eq.s32.totalorder %s8, 1
    %p25 = por %p23, %p24
    %p26 = scmp.ne.s32.totalorder %s18, %s21
    %p27 = scmp.eq.s32.totalorder %s8, 0
    %p28 = por %p26, %p27
    %p29 = scmp.ne.s32.totalorder %s18, %s21
    %p30 = scmp.eq.s32.totalorder %s13, 1
    %p31 = por %p29, %p30
    %p32 = scmp.ne.s32.totalorder %s21, %s22
    %p33 = scmp.eq.s32.totalorder %s13, 0
    %p34 = por %p32, %p33
    %p35 = scmp.ne.s32.totalorder %s21, %s22
    %p36 = scmp.eq.s32.totalorder %s14, 1
    %p37 = por %p35, %p36
    %p39 = scmp.ne.s32.totalorder %s22, %s38
    %p40 = scmp.eq.s32.totalorder %s14, 0
    %p41 = por %p39, %p40
    %s42 = ssub.s32 %s8, %s15
    %p43 = scmp.eq.s32.totalorder %s42, 0
    %s45 = sadd.s32 %s44, 1
    %s46 = scalar_select %p43, %s44, %s45
    %p49 = pneg %p43
    %p50 = scmp.eq.s32.totalorder %s8, 1
    %p51 = por %p49, %p50
    %p52 = scmp.ne.s32.totalorder %s44, %s47
    %p53 = scmp.eq.s32.totalorder %s8, 0
    %p54 = por %p52, %p53
    %p55 = scmp.ne.s32.totalorder %s44, %s47
    %p56 = scmp.eq.s32.totalorder %s13, 1
    %p57 = por %p55, %p56
    %p58 = scmp.ne.s32.totalorder %s47, %s48
    %p59 = scmp.eq.s32.totalorder %s13, 0
    %p60 = por %p58, %p59
    %p61 = scmp.ne.s32.totalorder %s47, %s48
    %p62 = scmp.eq.s32.totalorder %s14, 1
    %p63 = por %p61, %p62
    %p65 = scmp.ne.s32.totalorder %s48, %s64
    %p66 = scmp.eq.s32.totalorder %s14, 0
    %p67 = por %p65, %p66
    %s68 = ssub.s32 %s8, %s15
    %p69 = scmp.eq.s32.totalorder %s68, 0
    %s71 = sadd.s32 %s70, 1
    %s72 = scalar_select %p69, %s70, %s71
    %p75 = pneg %p69
    %p76 = scmp.eq.s32.totalorder %s8, 1
    %p77 = por %p75, %p76
    %p78 = scmp.ne.s32.totalorder %s70, %s73
    %p79 = scmp.eq.s32.totalorder %s8, 0
    %p80 = por %p78, %p79
    %p81 = scmp.ne.s32.totalorder %s70, %s73
    %p82 = scmp.eq.s32.totalorder %s13, 1
    %p83 = por %p81, %p82
    %p84 = scmp.ne.s32.totalorder %s73, %s74
    %p85 = scmp.eq.s32.totalorder %s13, 0
    %p86 = por %p84, %p85
    %p87 = scmp.ne.s32.totalorder %s73, %s74
    %p88 = scmp.eq.s32.totalorder %s14, 1
    %p89 = por %p87, %p88
    %p91 = scmp.ne.s32.totalorder %s74, %s90
    %p92 = scmp.eq.s32.totalorder %s14, 0
    %p93 = por %p91, %p92
    %p94 = scmp.le.s32.totalorder 1, %s8
    %p95 = scmp.lt.s32.totalorder %s8, 3
    %p96 = pnand %p94, %p95
    %p97 = pneg %p96
    // Predicated region
    $region9: #{tpu_custom_call.1} parent=5 // pred_check
      _
    $region10: #{tpu_custom_call.1} parent=5 // pred_check_branch
      %99 = sbr.rel (%p96) target = $region12
    $region11: #{tpu_custom_call.1} parent=5 // pred_region
      %s100 = ssub.s32 %s8, 1
    $region12: #{tpu_custom_call.1} parent=5 // pred_fallthru
      _
    %p101 = scmp.lt.s32.totalorder %s8, 2
    // Predicated region
    $region13: #{tpu_custom_call.1} parent=5 // pred_check
      %p102 = pneg %p101
    $region14: #{tpu_custom_call.1} parent=5 // pred_check_branch
      %104 = sbr.rel (%p102) target = $region16
    $region15: #{tpu_custom_call.1} parent=5 // pred_region
      // Predicated region
      $region17: #{tpu_custom_call.1} parent=15 // pred_check
        %p105 = pneg %p28
      $region18: #{tpu_custom_call.1} parent=15 // pred_check_branch
        %107 = sbr.rel (%p105) target = $region20
      $region19: #{tpu_custom_call.1} parent=15 // pred_region
        %p108 = scmp.lt.s32.totalorder %s8, 1
        %s109 = scalar_select %p108, %s8, 1
        %s110 = smul.addr %s109, 8
        %s111 = scalar_lea.vmem %s0, %s110
      $region20: #{tpu_custom_call.1} parent=15 // pred_fallthru
        _
      // Predicated region
      $region21: #{tpu_custom_call.1} parent=15 // pred_check
        %p112 = pneg %p54
      $region22: #{tpu_custom_call.1} parent=15 // pred_check_branch
        %114 = sbr.rel (%p112) target = $region24
      $region23: #{tpu_custom_call.1} parent=15 // pred_region
        %p115 = scmp.lt.s32.totalorder %s8, 1
        %s116 = scalar_select %p115, %s8, 1
        %s117 = smul.addr %s116, 8
        %s118 = scalar_lea.vmem %s1, %s117
      $region24: #{tpu_custom_call.1} parent=15 // pred_fallthru
        _
    $region16: #{tpu_custom_call.1} parent=5 // pred_fallthru
      _
    %p119 = scmp.le.s32.totalorder 1, %s8
    %p120 = scmp.lt.s32.totalorder %s8, 3
    %p121 = pnand %p119, %p120
    %p122 = pneg %p121
    // Predicated region
    $region25: #{tpu_custom_call.1} parent=5 // pred_check
      _
    $region26: #{tpu_custom_call.1} parent=5 // pred_check_branch
      %124 = sbr.rel (%p121) target = $region28
    $region27: #{tpu_custom_call.1} parent=5 // pred_region
      %s125 = ssub.s32 %s8, 1
      %p126 = scmp.lt.s32.totalorder %s13, 1
      %s127 = scalar_select %p126, %s13, 1
      %s128 = smul.addr %s127, 8
      %s129 = scalar_lea.vmem %s0, %s128
      %p130 = pneg %p34
      %p131 = pneg %p31
      %p132 = scmp.lt.s32.totalorder %s13, 1
      %s133 = scalar_select %p132, %s13, 1
      %s134 = smul.addr %s133, 8
      %s135 = scalar_lea.vmem %s1, %s134
      %p136 = pneg %p60
      %p137 = pneg %p57
      %p138 = pneg %p86
      %p139 = pneg %p83
      %p140 = scmp.lt.s32.totalorder %s13, 1
      %s141 = scalar_select %p140, %s13, 1
      %s142 = smul.addr %s141, 8
      %s143 = scalar_lea.vmem %s2, %s142
      %p144 = scmp.lt.s32.totalorder %s13, 1
      %s145 = scalar_select %p144, %s13, 1
      %s146 = smul.addr %s145, 8
      %s147 = scalar_lea.vmem %s0, %s146
      %p148 = scmp.lt.s32.totalorder %s13, 1
      %s149 = scalar_select %p148, %s13, 1
      %s150 = smul.addr %s149, 8
      %s151 = scalar_lea.vmem %s1, %s150
      %p152 = scmp.lt.s32.totalorder %s13, 1
      %s153 = scalar_select %p152, %s13, 1
      %s154 = smul.addr %s153, 8
      %s155 = scalar_lea.vmem %s2, %s154
      %v156 = vld [vmem:[%s147] sm:$0xff]
      %v157 = vld [vmem:[%s151] sm:$0xff]
      %vm158 = vcmask 130048
      %v159 = vsel %vm158, %v156, -inf
      %160 = vmax.xlane.f32.xlu0 %v159
      %v161 = vpop.xlane.xlu0 %160
      %v162 = vsub.f32 %v156, %v161
      %v163 = vmul.f32 %v162, 1.442695
      %v164 = vpow.pop %v163
      %v165 = vsel %vm158, %v164, 0.0
      %166 = vadd.xlane.f32.xlu0 %v165
      %v167 = vpop.xlane.xlu0 %166
      %v168 = vlog2.pop %v167
      %v169 = vmul.f32 %v168, 0.6931472
      %v170 = vlaneseq
      %v171 = vand.u32 %v170, 127
      %vm172 = vcmp.ne.s32.totalorder %v157, 4294967196
      %v173 = vsel %vm172, %v157, 0
      %174 = vset.pattern.permute.xlu0 0
      %175 = vperm.xlu0 %174, %v173
      %v176 = vpop.permute.xlu0 %175
      %vm177 = vcmp.eq.s32.totalorder %v171, %v176
      %v178 = vsel %vm177, %v162, 0.0
      %v179 = vsel %vm158, %v178, 0.0
      %180 = vadd.xlane.f32.xlu0 %v179
      %v181 = vpop.xlane.xlu0 %180
      %v182 = vsub.f32 %v169, %v181
      %v183 = vsel %vm172, %v182, 0.0
      %vm184 = vcmask 7168
      %185 = vst.msk [vmem:[%s155] sm:$0xff] %vm184, %v183
      %p186 = scmp.lt.s32.totalorder %s13, 1
      %s187 = scalar_select %p186, %s13, 1
      %s188 = smul.addr %s187, 8
      %s189 = scalar_lea.vmem %s2, %s188
      // Predicated region
      $region29: #{tpu_custom_call.1} parent=27 // pred_check
        %p190 = pneg %p83
      $region30: #{tpu_custom_call.1} parent=27 // pred_check_branch
        %192 = sbr.rel (%p190) target = $region32
      $region31: #{tpu_custom_call.1} parent=27 // pred_region
        _
      $region32: #{tpu_custom_call.1} parent=27 // pred_fallthru
        _
    $region28: #{tpu_custom_call.1} parent=5 // pred_fallthru
      _
    %p193 = scmp.le.s32.totalorder 2, %s8
    // Predicated region
    $region33: #{tpu_custom_call.1} parent=5 // pred_check
      %p194 = pneg %p193
    $region34: #{tpu_custom_call.1} parent=5 // pred_check_branch
      %196 = sbr.rel (%p194) target = $region36
    $region35: #{tpu_custom_call.1} parent=5 // pred_region
      %s197 = ssub.s32 %s8, 2
      // Predicated region
      $region37: #{tpu_custom_call.1} parent=35 // pred_check
        %p198 = pneg %p89
      $region38: #{tpu_custom_call.1} parent=35 // pred_check_branch
        %200 = sbr.rel (%p198) target = $region40
      $region39: #{tpu_custom_call.1} parent=35 // pred_region
        %p201 = scmp.lt.s32.totalorder %s14, 1
        %s202 = scalar_select %p201, %s14, 1
        %s203 = smul.addr %s202, 8
        %s204 = scalar_lea.vmem %s2, %s203
      $region40: #{tpu_custom_call.1} parent=35 // pred_fallthru
        _
    $region36: #{tpu_custom_call.1} parent=5 // pred_fallthru
      _
  $region6: #{tpu_custom_call.1} parent=0 // loop_footer
    %s12 = sadd.s32 1, %s8
  $region7: #{tpu_custom_call.1} parent=0 // loop_footer_branch
    %7 = sbr.rel target = $region3
  $region8: #{tpu_custom_call.1} parent=0 // loop_exit
    _

</llo_original>
